<compile_context>
chip_gen: v6e
topology: v6e:2x2x1
jax: 0.10.0
libtpu: 0.0.40
codegen_flags: <defaults>
</compile_context>

<pallas_src>
import functools

import jax
import jax.numpy as jnp
from jax.experimental import pallas as pl
from jax.experimental.pallas import tpu as pltpu

LN_EPS = 1e-5


def _round_up(x, m):
    return ((x + m - 1) // m) * m


def _cdiv(a, b):
    return (a + b - 1) // b


def _adapter_kernel(x_ref, wd_ref, wu_ref, p_ref, o_ref, *, true_d, dh_pad):
    """One (tm, D_pad) row tile: down-proj -> ReLU -> up-proj -> +residual -> LN."""
    x = x_ref[...]                                   # (tm, D_pad), activation dtype
    x_f32 = x.astype(jnp.float32)

    p = p_ref[...]                                   # (4, D_pad) f32 packed params
    b_down = p[0:1, :dh_pad]
    b_up = p[1:2, :]
    gamma = p[2:3, :]
    beta = p[3:4, :]

    cdt = wd_ref.dtype                               # matmul dtype (bf16 on the MXU fast path)

    # Down projection (f32 accumulation) + bias + ReLU; narrow to the MXU dtype
    # so the (tm, Dh_pad) intermediate is half-sized going into the second matmul.
    h = jnp.dot(x.astype(cdt), wd_ref[...], preferred_element_type=jnp.float32)
    h = jnp.maximum(h + b_down, 0.0).astype(cdt)

    # Up projection; dropout is identity at inference; residual + bias in f32.
    y = jnp.dot(h, wu_ref[...], preferred_element_type=jnp.float32)
    y = y + x_f32 + b_up

    # LayerNorm over the TRUE feature dim.  Padded columns of y are exactly 0
    # (zero-padded x / weights / biases), so the plain lane-sum is already the
    # correct mean numerator; centered values are masked before the variance sum.
    d_pad = y.shape[-1]
    inv_d = 1.0 / true_d
    mean = jnp.sum(y, axis=-1, keepdims=True) * inv_d
    cen = y - mean
    if d_pad != true_d:
        col = jax.lax.broadcasted_iota(jnp.int32, y.shape, dimension=1)
        cen = jnp.where(col < true_d, cen, 0.0)
    var = jnp.sum(cen * cen, axis=-1, keepdims=True) * inv_d
    y_hat = cen * jax.lax.rsqrt(var + LN_EPS)
    o_ref[...] = (y_hat * gamma + beta).astype(o_ref.dtype)


def _pad_2d(a, rows, cols, dtype):
    a = a.astype(dtype)
    if a.shape == (rows, cols):
        return a
    return jnp.zeros((rows, cols), dtype).at[: a.shape[0], : a.shape[1]].set(a)


def stable_adapter(x, w_down, b_down, w_up, b_up, ln_gamma, ln_beta,
                   *, use_bf16_matmul=True, out_dtype=None):
    """StableAdapter forward.  x: (B, T, D) -> (B, T, D).

    For bandwidth-bound deployments, pass x (and request out_dtype) in bfloat16:
    residual add and LayerNorm still run in f32 inside the kernel.
    """
    B, T, D = x.shape
    Dh = w_down.shape[1]
    N = B * T
    out_dtype = x.dtype if out_dtype is None else out_dtype

    # ---- lane-dense feature padding --------------------------------------
    d_pad = _round_up(D, 128)
    dh_pad = _round_up(Dh, 128)

    x2d = x.reshape(N, D)
    if d_pad != D:
        # TODO(synk): for real model sizes keep D a multiple of 128 so this
        # wrapper-side activation pad/slice (one extra HBM round trip) vanishes.
        x2d = jnp.pad(x2d, ((0, 0), (0, d_pad - D)))

    w_dtype = jnp.bfloat16 if use_bf16_matmul else jnp.float32
    wd = _pad_2d(w_down, d_pad, dh_pad, w_dtype)
    wu = _pad_2d(w_up, dh_pad, d_pad, w_dtype)

    # Pack the four small per-feature params into one loop-invariant operand:
    # row 0 = b_down (first Dh lanes), 1 = b_up, 2 = gamma, 3 = beta.
    params = jnp.zeros((4, d_pad), jnp.float32)
    params = params.at[0, :Dh].set(b_down.astype(jnp.float32))
    params = params.at[1, :D].set(b_up.astype(jnp.float32))
    params = params.at[2, :D].set(ln_gamma.astype(jnp.float32))
    params = params.at[3, :D].set(ln_beta.astype(jnp.float32))

    # ---- per-generation tile / VMEM sizing --------------------------------
    try:
        phys_vmem = int(pltpu.get_tpu_info().vmem_capacity_bytes)
    except Exception:
        phys_vmem = 64 << 20                        # conservative: v7x per-core VMEM
    big_vmem = phys_vmem >= (100 << 20)             # v5e / v6e (128 MiB) vs v7x (64 MiB)
    vmem_limit = min(phys_vmem * 3 // 4, 96 << 20)  # ~48 MiB on v7x, 96 MiB on v5e/v6e
    vmem_limit = max(int(vmem_limit), 32 << 20)

    x_bytes = jnp.dtype(x.dtype).itemsize
    o_bytes = jnp.dtype(out_dtype).itemsize
    w_bytes = jnp.dtype(w_dtype).itemsize
    in_bufs = 3 if big_vmem else 2                  # deeper pipelining where VMEM allows
    tm_cap = 1024 if big_vmem else 512

    # Budget includes pipeline buffers AND the f32 temporaries that live inside
    # the body (x_f32, y, cen, y_hat, ...) plus the narrowed (tm, Dh_pad) slab.
    fixed = 2 * d_pad * dh_pad * w_bytes + 8 * d_pad * 4 + (2 << 20)
    per_row = (in_bufs * d_pad * x_bytes
               + 2 * d_pad * o_bytes
               + 5 * d_pad * 4
               + d_pad * w_bytes
               + dh_pad * (4 + w_bytes))
    tm = max(8, (vmem_limit - fixed) // per_row)
    tm = min(tm, tm_cap)
    # Keep >= ~4 grid steps when there are enough rows (feeds both v7x TCs and
    # keeps the software pipeline busy).
    if N >= 4 * 8:
        tm = min(tm, _round_up(_cdiv(N, 4), 8))
    if tm >= N:
        tm = N                                      # single full-extent block
    else:
        tm = max(8, (tm // 8) * 8)
    grid = _cdiv(N, tm)

    cost = pl.CostEstimate(
        flops=int(4 * N * d_pad * dh_pad + 10 * N * d_pad),
        transcendentals=int(N),
        bytes_accessed=int(N * d_pad * (x_bytes + o_bytes)
                           + 2 * d_pad * dh_pad * w_bytes + 4 * d_pad * 4),
    )

    inv = pl.Buffered(1)  # loop-invariant operands: constant index_map, no double-buffering
    kernel = functools.partial(_adapter_kernel, true_d=D, dh_pad=dh_pad)

    out = pl.pallas_call(
        kernel,
        out_shape=jax.ShapeDtypeStruct((N, d_pad), out_dtype),
        grid_spec=pltpu.PrefetchScalarGridSpec(
            num_scalar_prefetch=0,
            grid=(grid,),
            in_specs=[
                pl.BlockSpec((tm, d_pad), lambda i: (i, 0),
                             pipeline_mode=pl.Buffered(in_bufs)),                   # x tile
                pl.BlockSpec((d_pad, dh_pad), lambda i: (0, 0), pipeline_mode=inv),  # W_down
                pl.BlockSpec((dh_pad, d_pad), lambda i: (0, 0), pipeline_mode=inv),  # W_up
                pl.BlockSpec((4, d_pad), lambda i: (0, 0), pipeline_mode=inv),       # packed params
            ],
            out_specs=pl.BlockSpec((tm, d_pad), lambda i: (i, 0)),
        ),
        compiler_params=pltpu.CompilerParams(
            dimension_semantics=("parallel",),      # row axis shards across v7x's 2 TCs
            vmem_limit_bytes=vmem_limit,
        ),
        cost_estimate=cost,
    )(x2d, wd, wu, params)

    if d_pad != D:
        out = out[:, :D]
    return out.reshape(B, T, D).astype(out_dtype)


def _reference(x, w_down, b_down, w_up, b_up, ln_gamma, ln_beta):
    h = jnp.maximum(x @ w_down + b_down, 0.0)
    y = h @ w_up + b_up + x
    mean = jnp.mean(y, axis=-1, keepdims=True)
    var = jnp.mean((y - mean) ** 2, axis=-1, keepdims=True)
    return (y - mean) / jnp.sqrt(var + LN_EPS) * ln_gamma + ln_beta


if __name__ == "__main__":
    key = jax.random.PRNGKey(0)
    B, T, D = 2, 8, 32            # feature_dim = 32, down dim = 16
    Dh = D // 2

    ks = jax.random.split(key, 5)
    x = jax.random.normal(ks[0], (B, T, D), jnp.float32)
    # deterministic "Linear"-style init
    w_down = jax.random.uniform(ks[1], (D, Dh), jnp.float32, -1.0, 1.0) / jnp.sqrt(D)
    b_down = jax.random.uniform(ks[2], (Dh,), jnp.float32, -1.0, 1.0) / jnp.sqrt(D)
    w_up = jax.random.uniform(ks[3], (Dh, D), jnp.float32, -1.0, 1.0) / jnp.sqrt(Dh)
    b_up = jax.random.uniform(ks[4], (D,), jnp.float32, -1.0, 1.0) / jnp.sqrt(Dh)
    ln_gamma = jnp.ones((D,), jnp.float32)
    ln_beta = jnp.zeros((D,), jnp.float32)

    ref = _reference(x, w_down, b_down, w_up, b_up, ln_gamma, ln_beta)

    # f32 matmul path: tight check against the reference (also exercises the
    # masked-LayerNorm path since D=32 is padded to 128 lanes).
    out_f32 = stable_adapter(x, w_down, b_down, w_up, b_up, ln_gamma, ln_beta,
                             use_bf16_matmul=False)
    out_f32 = jax.block_until_ready(out_f32)
    assert out_f32.shape == (B, T, D)
    assert jnp.allclose(out_f32, ref, atol=1e-5, rtol=1e-5), "f32 path mismatch"

    # bf16 matmul path (MXU-native): looser tolerance.
    out_bf16 = stable_adapter(x, w_down, b_down, w_up, b_up, ln_gamma, ln_beta,
                              use_bf16_matmul=True)
    out_bf16 = jax.block_until_ready(out_bf16)
    assert out_bf16.shape == (B, T, D)
    assert jnp.allclose(out_bf16, ref, atol=5e-2, rtol=5e-2), "bf16 path mismatch"

    print("KERNEL_OK")
</pallas_src>

<mosaic_0001>
module attributes {stable_mosaic.version = 11 : i64} {
  func.func @_adapter_kernel(%arg0: i32, %arg1: memref<16x128xf32, #tpu.memory_space<vmem>>, %arg2: memref<128x128xf32, #tpu.memory_space<vmem>>, %arg3: memref<128x128xf32, #tpu.memory_space<vmem>>, %arg4: memref<4x128xf32, #tpu.memory_space<vmem>>, %arg5: memref<16x128xf32, #tpu.memory_space<vmem>>) attributes {dimension_semantics = [#tpu.dimension_semantics<parallel>], iteration_bounds = array<i64: 1>, scalar_prefetch = 0 : i64, scratch_operands = 0 : i64, tpu.core_type = #tpu.core_type<tc>, window_params = [{pipeline_mode = #tpu.pipeline_mode<double_buffered>, transform_indices = @transform_0, window_bounds = array<i64: 16, 128>}, {pipeline_mode = #tpu.pipeline_mode<synchronous>, transform_indices = @transform_1, window_bounds = array<i64: 128, 128>}, {pipeline_mode = #tpu.pipeline_mode<synchronous>, transform_indices = @transform_2, window_bounds = array<i64: 128, 128>}, {pipeline_mode = #tpu.pipeline_mode<synchronous>, transform_indices = @transform_3, window_bounds = array<i64: 4, 128>}, {transform_indices = @transform_4, window_bounds = array<i64: 16, 128>}]} {
    %c0 = arith.constant 0 : index
    %c0_0 = arith.constant 0 : index
    %0 = vector.load %arg1[%c0, %c0_0] : memref<16x128xf32, #tpu.memory_space<vmem>>, vector<16x128xf32>
    %c0_1 = arith.constant 0 : index
    %c0_2 = arith.constant 0 : index
    %1 = vector.load %arg4[%c0_1, %c0_2] : memref<4x128xf32, #tpu.memory_space<vmem>>, vector<4x128xf32>
    %2 = vector.extract_strided_slice %1 {offsets = [0, 0], sizes = [1, 128], strides = [1, 1]} : vector<4x128xf32> to vector<1x128xf32>
    %3 = vector.extract_strided_slice %1 {offsets = [1, 0], sizes = [1, 128], strides = [1, 1]} : vector<4x128xf32> to vector<1x128xf32>
    %4 = vector.extract_strided_slice %1 {offsets = [2, 0], sizes = [1, 128], strides = [1, 1]} : vector<4x128xf32> to vector<1x128xf32>
    %5 = vector.extract_strided_slice %1 {offsets = [3, 0], sizes = [1, 128], strides = [1, 1]} : vector<4x128xf32> to vector<1x128xf32>
    %c0_3 = arith.constant 0 : index
    %c0_4 = arith.constant 0 : index
    %6 = vector.load %arg2[%c0_3, %c0_4] : memref<128x128xf32, #tpu.memory_space<vmem>>, vector<128x128xf32>
    %cst = arith.constant dense<0.000000e+00> : vector<16x128xf32>
    %7 = tpu.matmul %0, %6, %cst {dimension_numbers = #tpu.dot_dimension_numbers<[1], [0], [0], [1], [0, 0, 1, 1], [], []>} : vector<16x128xf32>, vector<128x128xf32>, vector<16x128xf32> -> vector<16x128xf32>
    %8 = vector.broadcast %2 : vector<1x128xf32> to vector<16x128xf32>
    %9 = arith.addf %7, %8 : vector<16x128xf32>
    %cst_5 = arith.constant 0.000000e+00 : f32
    %10 = vector.broadcast %cst_5 : f32 to vector<16x128xf32>
    %11 = arith.maximumf %9, %10 : vector<16x128xf32>
    %c0_6 = arith.constant 0 : index
    %c0_7 = arith.constant 0 : index
    %12 = vector.load %arg3[%c0_6, %c0_7] : memref<128x128xf32, #tpu.memory_space<vmem>>, vector<128x128xf32>
    %cst_8 = arith.constant dense<0.000000e+00> : vector<16x128xf32>
    %13 = tpu.matmul %11, %12, %cst_8 {dimension_numbers = #tpu.dot_dimension_numbers<[1], [0], [0], [1], [0, 0, 1, 1], [], []>} : vector<16x128xf32>, vector<128x128xf32>, vector<16x128xf32> -> vector<16x128xf32>
    %14 = arith.addf %13, %0 : vector<16x128xf32>
    %15 = vector.broadcast %3 : vector<1x128xf32> to vector<16x128xf32>
    %16 = arith.addf %14, %15 : vector<16x128xf32>
    %cst_9 = arith.constant dense<0.000000e+00> : vector<16xf32>
    %17 = vector.multi_reduction <add>, %16, %cst_9 [1] : vector<16x128xf32> to vector<16xf32>
    %18 = vector.shape_cast %17 : vector<16xf32> to vector<16x1xf32>
    %cst_10 = arith.constant 3.125000e-02 : f32
    %19 = vector.broadcast %cst_10 : f32 to vector<16x1xf32>
    %20 = arith.mulf %18, %19 : vector<16x1xf32>
    %21 = vector.broadcast %20 : vector<16x1xf32> to vector<16x128xf32>
    %22 = arith.subf %16, %21 : vector<16x128xf32>
    %23 = tpu.iota {dimensions = array<i32: 1>} : vector<16x128xi32>
    %c32_i32 = arith.constant 32 : i32
    %24 = vector.broadcast %c32_i32 : i32 to vector<16x128xi32>
    %25 = arith.cmpi slt, %23, %24 : vector<16x128xi32>
    %cst_11 = arith.constant 0.000000e+00 : f32
    %26 = vector.broadcast %cst_11 : f32 to vector<16x128xf32>
    %27 = arith.select %25, %22, %26 : vector<16x128xi1>, vector<16x128xf32>
    %28 = arith.mulf %27, %27 : vector<16x128xf32>
    %cst_12 = arith.constant dense<0.000000e+00> : vector<16xf32>
    %29 = vector.multi_reduction <add>, %28, %cst_12 [1] : vector<16x128xf32> to vector<16xf32>
    %30 = vector.shape_cast %29 : vector<16xf32> to vector<16x1xf32>
    %cst_13 = arith.constant 3.125000e-02 : f32
    %31 = vector.broadcast %cst_13 : f32 to vector<16x1xf32>
    %32 = arith.mulf %30, %31 : vector<16x1xf32>
    %cst_14 = arith.constant 9.99999974E-6 : f32
    %33 = vector.broadcast %cst_14 : f32 to vector<16x1xf32>
    %34 = arith.addf %32, %33 : vector<16x1xf32>
    %35 = math.rsqrt %34 : vector<16x1xf32>
    %36 = vector.broadcast %35 : vector<16x1xf32> to vector<16x128xf32>
    %37 = arith.mulf %27, %36 : vector<16x128xf32>
    %38 = vector.broadcast %4 : vector<1x128xf32> to vector<16x128xf32>
    %39 = arith.mulf %37, %38 : vector<16x128xf32>
    %40 = vector.broadcast %5 : vector<1x128xf32> to vector<16x128xf32>
    %41 = arith.addf %39, %40 : vector<16x128xf32>
    %c0_15 = arith.constant 0 : index
    %c0_16 = arith.constant 0 : index
    %42 = vector.load %arg5[%c0_15, %c0_16] : memref<16x128xf32, #tpu.memory_space<vmem>>, vector<16x128xf32>
    tpu.vector_store %arg5[%c0_15, %c0_16], %41 {strides = array<i32>} : memref<16x128xf32, #tpu.memory_space<vmem>>, vector<16x128xf32>,
    return
  }
  func.func @transform_0(%arg0: i32) -> (i32, i32) {
    %c0_i32 = arith.constant 0 : i32
    %c0_i32_0 = arith.constant 0 : i32
    return %arg0, %c0_i32 : i32, i32
  }
  func.func @transform_1(%arg0: i32) -> (i32, i32) {
    %c0_i32 = arith.constant 0 : i32
    %c0_i32_0 = arith.constant 0 : i32
    %c0_i32_1 = arith.constant 0 : i32
    return %c0_i32, %c0_i32_0 : i32, i32
  }
  func.func @transform_2(%arg0: i32) -> (i32, i32) {
    %c0_i32 = arith.constant 0 : i32
    %c0_i32_0 = arith.constant 0 : i32
    %c0_i32_1 = arith.constant 0 : i32
    return %c0_i32, %c0_i32_0 : i32, i32
  }
  func.func @transform_3(%arg0: i32) -> (i32, i32) {
    %c0_i32 = arith.constant 0 : i32
    %c0_i32_0 = arith.constant 0 : i32
    %c0_i32_1 = arith.constant 0 : i32
    return %c0_i32, %c0_i32_0 : i32, i32
  }
  func.func @transform_4(%arg0: i32) -> (i32, i32) {
    %c0_i32 = arith.constant 0 : i32
    %c0_i32_0 = arith.constant 0 : i32
    return %arg0, %c0_i32 : i32, i32
  }
}

</mosaic_0001>

<llo_original>
// kernel: tpu_custom_call.1
$region0: #{tpu_custom_call.1}
  #allocation0 [shape = 'u32[]', space=smem, size = 0x4, offset = 0x4, fixed_abs, tag = 'smem constant byte address 0x4 - core index']
  #allocation1 [shape = 'u32[144,128]{1,0:T(1,128)}', space=vmem, size = 0x12000, scoped, tag = 'internal scratch']
  %s0 = inlined_call_operand.hbm [shape: f32[16,128], index: 0, kind: input, shape index: {}]
  %s1 = inlined_call_operand.hbm [shape: f32[128,128], index: 1, kind: input, shape index: {}]
  %s2 = inlined_call_operand.hbm [shape: f32[128,128], index: 2, kind: input, shape index: {}]
  %s3 = inlined_call_operand.vmem [shape: f32[4,128], index: 3, kind: input, shape index: {}]
  %s4 = inlined_call_operand.hbm [shape: f32[16,128], index: 4, kind: output, shape index: {}]
  %s5 = sld [smem:[#allocation0]]
  $region38: #{tpu_custom_call.1} parent=0
    _
  %s7 = ssub.s32 1, %s5
  %s8 = scalar_select 0, %s7, %s5
  $region1: #{tpu_custom_call.1} parent=0
    #allocation2 [shape = 'u8[8192]{0}', space=vmem, size = 0x2000, scoped, tag = 'input window, operand 0, single buffered']
    #allocation3 [shape = 's32[1]{0}', space=sflag, size = 0x4, scoped, tag = 'scoped memory for tpu_custom_call.1']
    #allocation4 [shape = 's32[1]{0}', space=sflag, size = 0x4, scoped, tag = 'scoped memory for tpu_custom_call.1']
    #allocation5 [shape = 'u8[65536]{0}', space=vmem, size = 0x10000, scoped, tag = 'input window, operand 1, single buffered']
    #allocation6 [shape = 's32[1]{0}', space=sflag, size = 0x4, scoped, tag = 'scoped memory for tpu_custom_call.1']
    #allocation7 [shape = 'u8[65536]{0}', space=vmem, size = 0x10000, scoped, tag = 'input window, operand 2, single buffered']
    #allocation8 [shape = 'u8[8192]{0}', space=vmem, size = 0x2000, scoped, tag = 'output window, operand 0, single buffered']
    %9 = vsyncpa [#allocation3], 0
    %10 = vsyncpa [#allocation6], 0
    %11 = vsyncpa [#allocation4], 0
    // Predicated region
    $region2: #{tpu_custom_call.1} parent=1 // pred_check
      _
    $region3: #{tpu_custom_call.1} parent=1 // pred_check_branch
      %13 = sbr.rel (0) target = $region5
    $region4: #{tpu_custom_call.1} parent=1 // pred_region
      %s15 = ssub.s32 256, 256
      %16 = vsyncadd [#allocation3], %s15
      %s17 = sshll.u32 [#allocation2], 4
      %s18 = int_to_ptr.vmem [resolvable:$true] %s17
      %23 = dma.hbm_to_vmem [thread:$0]  %s0, 256, %s18, [#allocation3], 128, 128, 8
    $region5: #{tpu_custom_call.1} parent=1 // pred_fallthru
      _
    // Predicated region
    $region6: #{tpu_custom_call.1} parent=1 // pred_check
      _
    $region7: #{tpu_custom_call.1} parent=1 // pred_check_branch
      %25 = sbr.rel (0) target = $region9
    $region8: #{tpu_custom_call.1} parent=1 // pred_region
      %s27 = ssub.s32 2048, 2048
      %28 = vsyncadd [#allocation6], %s27
      %s29 = sshll.u32 [#allocation5], 4
      %s30 = int_to_ptr.vmem [resolvable:$true] %s29
      %35 = dma.hbm_to_vmem [thread:$0]  %s1, 2048, %s30, [#allocation6], 128, 128, 8
    $region9: #{tpu_custom_call.1} parent=1 // pred_fallthru
      _
    // Predicated region
    $region10: #{tpu_custom_call.1} parent=1 // pred_check
      _
    $region11: #{tpu_custom_call.1} parent=1 // pred_check_branch
      %37 = sbr.rel (0) target = $region13
    $region12: #{tpu_custom_call.1} parent=1 // pred_region
      %s39 = ssub.s32 2048, 2048
      %40 = vsyncadd [#allocation6], %s39
      %s41 = sshll.u32 [#allocation7], 4
      %s42 = int_to_ptr.vmem [resolvable:$true] %s41
      %47 = dma.hbm_to_vmem [thread:$0]  %s2, 2048, %s42, [#allocation6], 128, 128, 8
    $region13: #{tpu_custom_call.1} parent=1 // pred_fallthru
      _
    // Predicated region
    $region14: #{tpu_custom_call.1} parent=1 // pred_check
      _
    $region15: #{tpu_custom_call.1} parent=1 // pred_check_branch
      %49 = sbr.rel (0) target = $region17
    $region16: #{tpu_custom_call.1} parent=1 // pred_region
      _
    $region17: #{tpu_custom_call.1} parent=1 // pred_fallthru
      _
    // Predicated region
    $region18: #{tpu_custom_call.1} parent=1 // pred_check
      _
    $region19: #{tpu_custom_call.1} parent=1 // pred_check_branch
      %51 = sbr.rel (0) target = $region21
    $region20: #{tpu_custom_call.1} parent=1 // pred_region
      %52 = dma.done [#allocation3], 256
    $region21: #{tpu_custom_call.1} parent=1 // pred_fallthru
      _
    // Predicated region
    $region22: #{tpu_custom_call.1} parent=1 // pred_check
      _
    $region23: #{tpu_custom_call.1} parent=1 // pred_check_branch
      %54 = sbr.rel (0) target = $region25
    $region24: #{tpu_custom_call.1} parent=1 // pred_region
      %55 = dma.done [#allocation6], 2048
    $region25: #{tpu_custom_call.1} parent=1 // pred_fallthru
      _
    // Predicated region
    $region26: #{tpu_custom_call.1} parent=1 // pred_check
      _
    $region27: #{tpu_custom_call.1} parent=1 // pred_check_branch
      %57 = sbr.rel (0) target = $region29
    $region28: #{tpu_custom_call.1} parent=1 // pred_region
      %58 = dma.done [#allocation6], 2048
    $region29: #{tpu_custom_call.1} parent=1 // pred_fallthru
      _
    %v59 = vld [vmem:[#allocation2] sm:$0xff]
    %v60 = vld [vmem:[#allocation2 + $0x8] sm:$0xff]
    %v61 = vld [vmem:[%s3] sm:$0xf]
    %v62 = vld [vmem:[#allocation5] sm:$0xff]
    %v63 = vld [vmem:[#allocation5 + $0x8] sm:$0xff]
    %v64 = vld [vmem:[#allocation5 + $0x10] sm:$0xff]
    %v65 = vld [vmem:[#allocation5 + $0x18] sm:$0xff]
    %v66 = vld [vmem:[#allocation5 + $0x20] sm:$0xff]
    %v67 = vld [vmem:[#allocation5 + $0x28] sm:$0xff]
    %v68 = vld [vmem:[#allocation5 + $0x30] sm:$0xff]
    %v69 = vld [vmem:[#allocation5 + $0x38] sm:$0xff]
    %v70 = vld [vmem:[#allocation5 + $0x40] sm:$0xff]
    %v71 = vld [vmem:[#allocation5 + $0x48] sm:$0xff]
    %v72 = vld [vmem:[#allocation5 + $0x50] sm:$0xff]
    %v73 = vld [vmem:[#allocation5 + $0x58] sm:$0xff]
    %v74 = vld [vmem:[#allocation5 + $0x60] sm:$0xff]
    %v75 = vld [vmem:[#allocation5 + $0x68] sm:$0xff]
    %v76 = vld [vmem:[#allocation5 + $0x70] sm:$0xff]
    %v77 = vld [vmem:[#allocation5 + $0x78] sm:$0xff]
    %v78 = vlaneseq
    %v79 = vshrl.u32 %v78, 7
    %v80 = vsub.s32 0, %v79
    %v81 = vrot.slane %v61, %v80
    %82 = vmatprep.subr.mxu0 0.0
    %83 = vmatpush1.msra.mxu0 %v77
    %84 = vmatprep.subr.mxu0 0.0
    %85 = vmatpush1.msra.mxu0 %v76
    %86 = vmatprep.subr.mxu0 0.0
    %87 = vmatpush1.msra.mxu0 %v75
    %88 = vmatprep.subr.mxu0 0.0
    %89 = vmatpush1.msra.mxu0 %v74
    %90 = vmatprep.subr.mxu0 0.0
    %91 = vmatpush1.msra.mxu0 %v73
    %92 = vmatprep.subr.mxu0 0.0
    %93 = vmatpush1.msra.mxu0 %v72
    %94 = vmatprep.subr.mxu0 0.0
    %95 = vmatpush1.msra.mxu0 %v71
    %96 = vmatprep.subr.mxu0 0.0
    %97 = vmatpush1.msra.mxu0 %v70
    %98 = vmatprep.subr.mxu0 0.0
    %99 = vmatpush1.msra.mxu0 %v69
    %100 = vmatprep.subr.mxu0 0.0
    %101 = vmatpush1.msra.mxu0 %v68
    %102 = vmatprep.subr.mxu0 0.0
    %103 = vmatpush1.msra.mxu0 %v67
    %104 = vmatprep.subr.mxu0 0.0
    %105 = vmatpush1.msra.mxu0 %v66
    %106 = vmatprep.subr.mxu0 0.0
    %107 = vmatpush1.msra.mxu0 %v65
    %108 = vmatprep.subr.mxu0 0.0
    %109 = vmatpush1.msra.mxu0 %v64
    %110 = vmatprep.subr.mxu0 0.0
    %111 = vmatpush1.msra.mxu0 %v63
    %112 = vmatprep.subr.mxu0 0.0
    %113 = vmatpush1.msra.mxu0 %v62
    %114 = vmatprep.subr.mxu0 0.0
    %115 = vmatpush2.msra.mxu0 0.0
    %116 = vmatprep.subr.mxu0 0.0
    %117 = vmatpush2.msra.mxu0 0.0
    %118 = vmatprep.subr.mxu0 0.0
    %119 = vmatpush2.msra.mxu0 0.0
    %120 = vmatprep.subr.mxu0 0.0
    %121 = vmatpush2.msra.mxu0 0.0
    %122 = vmatprep.subr.mxu0 0.0
    %123 = vmatpush2.msra.mxu0 0.0
    %124 = vmatprep.subr.mxu0 0.0
    %125 = vmatpush2.msra.mxu0 0.0
    %126 = vmatprep.subr.mxu0 0.0
    %127 = vmatpush2.msra.mxu0 0.0
    %128 = vmatprep.subr.mxu0 0.0
    %129 = vmatpush2.msra.mxu0 0.0
    %130 = vmatprep.subr.mxu0 0.0
    %131 = vmatpush2.msra.mxu0 0.0
    %132 = vmatprep.subr.mxu0 0.0
    %133 = vmatpush2.msra.mxu0 0.0
    %134 = vmatprep.subr.mxu0 0.0
    %135 = vmatpush2.msra.mxu0 0.0
    %136 = vmatprep.subr.mxu0 0.0
    %137 = vmatpush2.msra.mxu0 0.0
    %138 = vmatprep.subr.mxu0 0.0
    %139 = vmatpush2.msra.mxu0 0.0
    %140 = vmatprep.subr.mxu0 0.0
    %141 = vmatpush2.msra.mxu0 0.0
    %142 = vmatprep.subr.mxu0 0.0
    %143 = vmatpush2.msra.mxu0 0.0
    %144 = vmatprep.subr.mxu0 0.0
    %145 = vmatpush2.msra.mxu0 0.0
    %146 = vmatprep.mubr.f32.mxu0 0.0
    %147 = vmatmul.mubr.f32.gmra.mxu0 %v59
    %v148 = vpop.f32.mrf.mxu0
    %v149 = vadd.f32 %v81, %v148
    %v150 = vpop.f32.mrf.mxu0
    %151 = vmatprep.mubr.f32.mxu0 0.0
    %152 = vmatmul.mubr.f32.gmra.mxu0 %v60
    %v153 = vpop.f32.mrf.mxu0
    %v154 = vadd.f32 %v81, %v153
    %v155 = vpop.f32.mrf.mxu0
    %156 = vdwg.mxu0
    %v157 = vmax.f32 %v149, 0.0
    %v158 = vmax.f32 %v154, 0.0
    %v159 = vld [vmem:[#allocation7] sm:$0xff]
    %v160 = vld [vmem:[#allocation7 + $0x8] sm:$0xff]
    %v161 = vld [vmem:[#allocation7 + $0x10] sm:$0xff]
    %v162 = vld [vmem:[#allocation7 + $0x18] sm:$0xff]
    %v163 = vld [vmem:[#allocation7 + $0x20] sm:$0xff]
    %v164 = vld [vmem:[#allocation7 + $0x28] sm:$0xff]
    %v165 = vld [vmem:[#allocation7 + $0x30] sm:$0xff]
    %v166 = vld [vmem:[#allocation7 + $0x38] sm:$0xff]
    %v167 = vld [vmem:[#allocation7 + $0x40] sm:$0xff]
    %v168 = vld [vmem:[#allocation7 + $0x48] sm:$0xff]
    %v169 = vld [vmem:[#allocation7 + $0x50] sm:$0xff]
    %v170 = vld [vmem:[#allocation7 + $0x58] sm:$0xff]
    %v171 = vld [vmem:[#allocation7 + $0x60] sm:$0xff]
    %v172 = vld [vmem:[#allocation7 + $0x68] sm:$0xff]
    %v173 = vld [vmem:[#allocation7 + $0x70] sm:$0xff]
    %v174 = vld [vmem:[#allocation7 + $0x78] sm:$0xff]
    %175 = vmatprep.subr.mxu0 0.0
    %176 = vmatpush1.msra.mxu0 %v174
    %177 = vmatprep.subr.mxu0 0.0
    %178 = vmatpush1.msra.mxu0 %v173
    %179 = vmatprep.subr.mxu0 0.0
    %180 = vmatpush1.msra.mxu0 %v172
    %181 = vmatprep.subr.mxu0 0.0
    %182 = vmatpush1.msra.mxu0 %v171
    %183 = vmatprep.subr.mxu0 0.0
    %184 = vmatpush1.msra.mxu0 %v170
    %185 = vmatprep.subr.mxu0 0.0
    %186 = vmatpush1.msra.mxu0 %v169
    %187 = vmatprep.subr.mxu0 0.0
    %188 = vmatpush1.msra.mxu0 %v168
    %189 = vmatprep.subr.mxu0 0.0
    %190 = vmatpush1.msra.mxu0 %v167
    %191 = vmatprep.subr.mxu0 0.0
    %192 = vmatpush1.msra.mxu0 %v166
    %193 = vmatprep.subr.mxu0 0.0
    %194 = vmatpush1.msra.mxu0 %v165
    %195 = vmatprep.subr.mxu0 0.0
    %196 = vmatpush1.msra.mxu0 %v164
    %197 = vmatprep.subr.mxu0 0.0
    %198 = vmatpush1.msra.mxu0 %v163
    %199 = vmatprep.subr.mxu0 0.0
    %200 = vmatpush1.msra.mxu0 %v162
    %201 = vmatprep.subr.mxu0 0.0
    %202 = vmatpush1.msra.mxu0 %v161
    %203 = vmatprep.subr.mxu0 0.0
    %204 = vmatpush1.msra.mxu0 %v160
    %205 = vmatprep.subr.mxu0 0.0
    %206 = vmatpush1.msra.mxu0 %v159
    %207 = vmatprep.subr.mxu0 0.0
    %208 = vmatpush2.msra.mxu0 0.0
    %209 = vmatprep.subr.mxu0 0.0
    %210 = vmatpush2.msra.mxu0 0.0
    %211 = vmatprep.subr.mxu0 0.0
    %212 = vmatpush2.msra.mxu0 0.0
    %213 = vmatprep.subr.mxu0 0.0
    %214 = vmatpush2.msra.mxu0 0.0
    %215 = vmatprep.subr.mxu0 0.0
    %216 = vmatpush2.msra.mxu0 0.0
    %217 = vmatprep.subr.mxu0 0.0
    %218 = vmatpush2.msra.mxu0 0.0
    %219 = vmatprep.subr.mxu0 0.0
    %220 = vmatpush2.msra.mxu0 0.0
    %221 = vmatprep.subr.mxu0 0.0
    %222 = vmatpush2.msra.mxu0 0.0
    %223 = vmatprep.subr.mxu0 0.0
    %224 = vmatpush2.msra.mxu0 0.0
    %225 = vmatprep.subr.mxu0 0.0
    %226 = vmatpush2.msra.mxu0 0.0
    %227 = vmatprep.subr.mxu0 0.0
    %228 = vmatpush2.msra.mxu0 0.0
    %229 = vmatprep.subr.mxu0 0.0
    %230 = vmatpush2.msra.mxu0 0.0
    %231 = vmatprep.subr.mxu0 0.0
    %232 = vmatpush2.msra.mxu0 0.0
    %233 = vmatprep.subr.mxu0 0.0
    %234 = vmatpush2.msra.mxu0 0.0
    %235 = vmatprep.subr.mxu0 0.0
    %236 = vmatpush2.msra.mxu0 0.0
    %237 = vmatprep.subr.mxu0 0.0
    %238 = vmatpush2.msra.mxu0 0.0
    %239 = vmatprep.mubr.f32.mxu0 0.0
    %240 = vmatmul.mubr.f32.gmra.mxu0 %v157
    %v241 = vpop.f32.mrf.mxu0
    %v242 = vadd.f32 %v59, %v241
    %v243 = vpop.f32.mrf.mxu0
    %244 = vmatprep.mubr.f32.mxu0 0.0
    %245 = vmatmul.mubr.f32.gmra.mxu0 %v158
    %v246 = vpop.f32.mrf.mxu0
    %v247 = vadd.f32 %v60, %v246
    %v248 = vpop.f32.mrf.mxu0
    %249 = vdwg.mxu0
    %v250 = vlaneseq
    %v251 = vshrl.u32 %v250, 7
    %v252 = vsub.s32 1, %v251
    %v253 = vrot.slane %v61, %v252
    %v254 = vadd.f32 %v242, %v253
    %v255 = vadd.f32 %v247, %v253
    %256 = vadd.xlane.f32.xlu0 %v254
    %v257 = vpop.xlane.xlu0 %256
    %258 = vadd.xlane.f32.xlu0 %v255
    %v259 = vpop.xlane.xlu0 %258
    %v260 = vmul.f32 %v257, 0.03125
    %v261 = vmul.f32 %v259, 0.03125
    %v262 = vsub.f32 %v254, %v260
    %v263 = vsub.f32 %v255, %v261
    %v264 = vlaneseq
    %v265 = vand.u32 %v264, 127
    %vm266 = vcmp.lt.s32.totalorder %v265, 32
    %v267 = vsel %vm266, %v262, 0.0
    %v268 = vsel %vm266, %v263, 0.0
    %v269 = vmul.f32 %v267, %v267
    %v270 = vmul.f32 %v268, %v268
    %271 = vadd.xlane.f32.xlu0 %v269
    %v272 = vpop.xlane.xlu0 %271
    %273 = vadd.xlane.f32.xlu0 %v270
    %v274 = vpop.xlane.xlu0 %273
    %v275 = vmul.f32 %v272, 0.03125
    %v276 = vmul.f32 %v274, 0.03125
    %v277 = vadd.f32 %v275, 1e-05
    %v278 = vadd.f32 %v276, 1e-05
    %v279 = vrsqrt.pop %v277
    %v280 = vrsqrt.pop %v278
    %v281 = vmul.f32 %v267, %v279
    %v282 = vmul.f32 %v268, %v280
    %v283 = vlaneseq
    %v284 = vshrl.u32 %v283, 7
    %v285 = vsub.s32 2, %v284
    %v286 = vrot.slane %v61, %v285
    %v287 = vmul.f32 %v281, %v286
    %v288 = vmul.f32 %v282, %v286
    %v289 = vlaneseq
    %v290 = vshrl.u32 %v289, 7
    %v291 = vsub.s32 3, %v290
    %v292 = vrot.slane %v61, %v291
    %v293 = vadd.f32 %v287, %v292
    %v294 = vadd.f32 %v288, %v292
    %295 = vst [vmem:[#allocation8] sm:$0xff] %v293
    %296 = vst [vmem:[#allocation8 + $0x8] sm:$0xff] %v294
    // Predicated region
    $region30: #{tpu_custom_call.1} parent=1 // pred_check
      _
    $region31: #{tpu_custom_call.1} parent=1 // pred_check_branch
      %298 = sbr.rel (0) target = $region33
    $region32: #{tpu_custom_call.1} parent=1 // pred_region
      %s300 = ssub.s32 256, 256
      %301 = vsyncadd [#allocation4], %s300
      %s302 = sshll.u32 [#allocation8], 4
      %s303 = int_to_ptr.vmem [resolvable:$true] %s302
      %308 = dma.vmem_to_hbm [thread:$0]  %s303, 256, %s4, [#allocation4], 128, 128, 8
    $region33: #{tpu_custom_call.1} parent=1 // pred_fallthru
      _
    // Predicated region
    $region34: #{tpu_custom_call.1} parent=1 // pred_check
      _
    $region35: #{tpu_custom_call.1} parent=1 // pred_check_branch
      %310 = sbr.rel (0) target = $region37
    $region36: #{tpu_custom_call.1} parent=1 // pred_region
      %311 = dma.done [#allocation4], 256
    $region37: #{tpu_custom_call.1} parent=1 // pred_fallthru
      _
    %312 = vsyncpa [#allocation3], 1
    %313 = vsyncpa [#allocation6], 1
    %314 = vsyncpa [#allocation4], 1

</llo_original>
